<compile_context>
chip_gen: v6e
topology: v6e:2x2x1
jax: 0.10.0
libtpu: 0.0.40
codegen_flags: <defaults>
</compile_context>

<pallas_src>
import functools

import jax
import jax.numpy as jnp
from jax.experimental import pallas as pl
from jax.experimental.pallas import tpu as pltpu


def _round_up(x, m):
    return (x + m - 1) // m * m


def _mean_reducer_kernel(eps, seq_len, seq_tile,
                         h_ref, m_ref, inv_ref, w_ref, b_ref, g_ref, beta_ref,
                         o_ref, acc_ref):
    """One (batch-tile, seq-tile) grid step.

    h_ref   : [TB, TS, H]  hidden-state tile (original dtype, un-padded array)
    m_ref   : [TB, TS]     mask tile (zero-padded to the block grid)
    inv_ref : [TB, 1]      1 / (sqrt)(sum(mask)) per batch row (precomputed)
    w_ref   : [H, R]       dense1 weight;  b/g/beta : [1, R]
    o_ref   : [TB, R]      output tile
    acc_ref : [TB, H]      f32 pooled-sum accumulator (VMEM scratch)
    """
    s = pl.program_id(1)

    @pl.when(s == 0)
    def _():
        acc_ref[...] = jnp.zeros_like(acc_ref)

    h = h_ref[...]
    m = m_ref[...]
    if seq_len % seq_tile != 0:
        # The last sequence tile reads past the (un-padded) hidden tensor.  The
        # mask is zero there, but NaN/Inf garbage would still poison the sum
        # (NaN * 0 == NaN), so explicitly zero the tail.
        pos = jax.lax.broadcasted_iota(jnp.int32, (1, seq_tile), 1) + s * seq_tile
        keep = pos < seq_len                          # (1, TS)
        h = jnp.where(keep[:, :, None], h, 0)

    # Masked partial sum over this sequence tile on the MXU with f32 accumulate:
    #   [TB, 1, TS] @ [TB, TS, H] -> [TB, 1, H]
    part = jnp.einsum("bks,bsh->bkh", m[:, None, :], h,
                      preferred_element_type=jnp.float32)
    acc_ref[...] += part[:, 0, :]

    @pl.when(s == pl.num_programs(1) - 1)
    def _():
        pooled = acc_ref[...] * inv_ref[...]                       # [TB, H] f32
        # dense1: [TB, H] @ [H, R] + [1, R]
        x = jnp.dot(pooled, w_ref[...].astype(jnp.float32),
                    preferred_element_type=jnp.float32) + b_ref[...]
        # LayerNorm over the last dim (biased variance, torch.nn.LayerNorm).
        mu = jnp.mean(x, axis=-1, keepdims=True)
        xc = x - mu
        var = jnp.mean(xc * xc, axis=-1, keepdims=True)
        y = xc * jax.lax.rsqrt(var + eps) * g_ref[...] + beta_ref[...]
        o_ref[...] = y.astype(o_ref.dtype)


def mean_reducer(hidden_states, mask, w, b, gamma, beta,
                 *, sqrt=True, layer_norm_eps=1e-12, seq_tile=None):
    """hidden_states: [B, S, H], mask: [B, S]; w: [H, R], b/gamma/beta: [R].
    Returns [B, 1, R] float32 (same shape/semantics as the PyTorch module)."""
    B, S, H = hidden_states.shape
    R = w.shape[1]
    h_dtype = hidden_states.dtype
    h_item = jnp.dtype(h_dtype).itemsize

    # Batch tile: 8 rows fill the 8 sublanes of a vreg; for tiny batches use B
    # directly (the "equal full dim" layout exemption) so nothing is padded.
    TB = 8 if B >= 8 else B
    B_pad = _round_up(B, TB)

    # VMEM budget: <=75% of physical VMEM, capped at 64 MiB, so the same code
    # holds on v5e/v6e (128 MiB physical) and v7x (64 MiB physical).
    try:
        vmem_cap = pltpu.get_tpu_info().vmem_capacity_bytes
    except Exception:
        vmem_cap = 64 * 1024 * 1024
    vmem_limit = int(min(vmem_cap * 3 // 4, 64 * 1024 * 1024))

    # Sequence tile sized from a ~4 MiB per-tile DMA budget.
    # TODO(synk): also tile H for very large hidden sizes.
    tile_budget_bytes = 4 * 1024 * 1024
    if seq_tile is not None:
        TS = S if seq_tile >= S else int(seq_tile)
    else:
        ts_budget = max(8, tile_budget_bytes // (TB * H * h_item))
        TS = S if S <= ts_budget else max(128, (ts_budget // 128) * 128)
    if TS < S and TS % 128 != 0:
        raise ValueError("sequence tile must be a multiple of 128 when S is tiled")
    n_seq = pl.cdiv(S, TS)
    S_pad = n_seq * TS

    # Only the small per-token mask (and per-row divisor) is padded/cast; the
    # big hidden tensor goes in as-is.  Garbage read by padded batch rows or the
    # partial last hidden block stays confined to its own rows (all ops are
    # row-wise) and is sliced off below.
    mk = jnp.pad(mask, ((0, B_pad - B), (0, S_pad - S))).astype(h_dtype)

    denom = jnp.sum(mask.astype(jnp.float32), axis=1)
    if sqrt:
        denom = jnp.sqrt(denom)
    safe = jnp.where(denom > 0, denom, 1.0)
    inv = jnp.where(denom > 0, 1.0 / safe, 0.0)
    inv = jnp.pad(inv, (0, B_pad - B)).reshape(B_pad, 1)

    b2 = b.reshape(1, R).astype(jnp.float32)
    g2 = gamma.reshape(1, R).astype(jnp.float32)
    beta2 = beta.reshape(1, R).astype(jnp.float32)

    grid = (B_pad // TB, n_seq)
    # TODO(synk): on v7x (2 TensorCores) with a single batch tile and long S,
    # split the sequence reduction across both cores (2 partial sums + combine).
    kernel = functools.partial(_mean_reducer_kernel, float(layer_norm_eps),
                               int(S), int(TS))

    w_item = jnp.dtype(w.dtype).itemsize
    cost = pl.CostEstimate(
        flops=int(2 * B * S * H + 2 * B * H * R),
        transcendentals=int(B),
        bytes_accessed=int(B * S * H * h_item + B_pad * S_pad * h_item
                           + H * R * w_item + B_pad * R * 4),
    )

    def build(const_mode):
        # Grid-invariant operands: single-buffer them when supported (saves a
        # full extra VMEM copy of W — matters for large H*R on v7x's 64 MiB).
        def const_spec(shape):
            if const_mode is None:
                return pl.BlockSpec(shape, lambda i, s: (0, 0))
            return pl.BlockSpec(shape, lambda i, s: (0, 0),
                                pipeline_mode=const_mode)

        return pl.pallas_call(
            kernel,
            out_shape=jax.ShapeDtypeStruct((B_pad, R), jnp.float32),
            grid_spec=pltpu.PrefetchScalarGridSpec(
                num_scalar_prefetch=0,
                grid=grid,
                in_specs=[
                    pl.BlockSpec((TB, TS, H), lambda i, s: (i, s, 0)),   # hidden
                    pl.BlockSpec((TB, TS), lambda i, s: (i, s)),         # mask
                    pl.BlockSpec((TB, 1), lambda i, s: (i, 0)),          # 1/denom
                    const_spec((H, R)),                                  # dense1 W
                    const_spec((1, R)),                                  # dense1 b
                    const_spec((1, R)),                                  # LN gamma
                    const_spec((1, R)),                                  # LN beta
                ],
                out_specs=pl.BlockSpec((TB, R), lambda i, s: (i, 0)),
                scratch_shapes=[pltpu.VMEM((TB, H), jnp.float32)],
            ),
            compiler_params=pltpu.CompilerParams(
                dimension_semantics=("parallel", "arbitrary"),
                vmem_limit_bytes=vmem_limit),
            cost_estimate=cost,
        )

    args = (hidden_states, mk, inv, w, b2, g2, beta2)
    try:
        out = build(pl.Buffered(1))(*args)
    except Exception:
        # Fallback for Pallas versions that reject BlockSpec.pipeline_mode.
        out = build(None)(*args)

    # TODO(synk): if R stays small (<128) while B grows, pad R to 128 here for
    # unmasked lane-dense output stores and slice it off afterwards.
    return out[:B].reshape(B, 1, R)


def mean_reducer_ref(hidden_states, mask, w, b, gamma, beta,
                     *, sqrt=True, eps=1e-12):
    # pure-JAX reference mirroring the PyTorch code
    sums = jnp.einsum("bsh,bs->bh", hidden_states, mask)[:, None, :]  # [B,1,H]
    div = jnp.sum(mask, axis=1).reshape(-1, 1, 1)
    if sqrt:
        div = jnp.sqrt(div)
    pooled = sums / div
    x = pooled @ w + b
    mu = jnp.mean(x, axis=-1, keepdims=True)
    var = jnp.mean((x - mu) ** 2, axis=-1, keepdims=True)
    return (x - mu) / jnp.sqrt(var + eps) * gamma + beta


if __name__ == "__main__":
    key = jax.random.PRNGKey(0)
    k1, k2, k3, k4 = jax.random.split(key, 4)

    # Shared deterministic synthetic parameters (not a checkpoint load).
    H, R = 32, 16
    w = jax.random.normal(k2, (H, R), dtype=jnp.float32) * 0.05   # dense1 (H->R)
    b = jax.random.normal(k3, (R,), dtype=jnp.float32) * 0.01     # dense1 bias
    gamma = jnp.ones((R,), jnp.float32)                           # LN weight
    beta = jnp.zeros((R,), jnp.float32)                           # LN bias

    # Case 1: module-sized demo (B=2, S=8) — single sequence tile.
    B, S = 2, 8
    hidden_states = jax.random.normal(k1, (B, S, H), dtype=jnp.float32)
    mask = jnp.stack([
        jnp.ones((S,), jnp.float32),
        jnp.concatenate([jnp.ones((5,), jnp.float32),
                         jnp.zeros((S - 5,), jnp.float32)]),
    ], axis=0)

    out = mean_reducer(hidden_states, mask, w, b, gamma, beta, sqrt=True)
    out = jax.block_until_ready(out)
    ref = mean_reducer_ref(hidden_states, mask, w, b, gamma, beta, sqrt=True)
    assert out.shape == (B, 1, R), out.shape
    assert jnp.allclose(out, ref, atol=1e-5, rtol=1e-5), "case 1 mismatch"

    # Case 2: tiled sequence with a ragged tail (exercises the multi-step f32
    # accumulator and the in-kernel tail masking of the un-padded hidden).
    B2, S2 = 3, 200
    hs2 = jax.random.normal(k4, (B2, S2, H), dtype=jnp.float32)
    lengths = jnp.array([S2, 130, 77])
    mask2 = (jnp.arange(S2)[None, :] < lengths[:, None]).astype(jnp.float32)
    out2 = mean_reducer(hs2, mask2, w, b, gamma, beta, sqrt=True, seq_tile=128)
    out2 = jax.block_until_ready(out2)
    ref2 = mean_reducer_ref(hs2, mask2, w, b, gamma, beta, sqrt=True)
    assert out2.shape == (B2, 1, R), out2.shape
    assert jnp.allclose(out2, ref2, atol=5e-5, rtol=5e-5), "case 2 mismatch"

    print("KERNEL_OK")
</pallas_src>

<mosaic_0001>
module attributes {stable_mosaic.version = 11 : i64} {
  func.func @_mean_reducer_kernel(%arg0: i32, %arg1: i32, %arg2: memref<2x8x32xf32, #tpu.memory_space<vmem>>, %arg3: memref<2x8xf32, #tpu.memory_space<vmem>>, %arg4: memref<2x1xf32, #tpu.memory_space<vmem>>, %arg5: memref<32x16xf32, #tpu.memory_space<vmem>>, %arg6: memref<1x16xf32, #tpu.memory_space<vmem>>, %arg7: memref<1x16xf32, #tpu.memory_space<vmem>>, %arg8: memref<1x16xf32, #tpu.memory_space<vmem>>, %arg9: memref<2x16xf32, #tpu.memory_space<vmem>>, %arg10: memref<2x32xf32, #tpu.memory_space<vmem>>) attributes {dimension_semantics = [#tpu.dimension_semantics<parallel>, #tpu.dimension_semantics<arbitrary>], iteration_bounds = array<i64: 1, 1>, scalar_prefetch = 0 : i64, scratch_operands = 1 : i64, tpu.core_type = #tpu.core_type<tc>, window_params = [{transform_indices = @transform_0, window_bounds = array<i64: 2, 8, 32>}, {transform_indices = @transform_1, window_bounds = array<i64: 2, 8>}, {transform_indices = @transform_2, window_bounds = array<i64: 2, 1>}, {pipeline_mode = #tpu.pipeline_mode<synchronous>, transform_indices = @transform_3, window_bounds = array<i64: 32, 16>}, {pipeline_mode = #tpu.pipeline_mode<synchronous>, transform_indices = @transform_4, window_bounds = array<i64: 1, 16>}, {pipeline_mode = #tpu.pipeline_mode<synchronous>, transform_indices = @transform_5, window_bounds = array<i64: 1, 16>}, {pipeline_mode = #tpu.pipeline_mode<synchronous>, transform_indices = @transform_6, window_bounds = array<i64: 1, 16>}, {transform_indices = @transform_7, window_bounds = array<i64: 2, 16>}]} {
    %c0_i32 = arith.constant 0 : i32
    %0 = arith.cmpi eq, %arg1, %c0_i32 : i32
    %1 = arith.extui %0 : i1 to i32
    %c0_i32_0 = arith.constant 0 : i32
    %2 = arith.cmpi ne, %1, %c0_i32_0 : i32
    scf.if %2 {
      %cst_11 = arith.constant 0.000000e+00 : f32
      %14 = vector.broadcast %cst_11 : f32 to vector<2x32xf32>
      %c0_12 = arith.constant 0 : index
      %c0_13 = arith.constant 0 : index
      %15 = vector.load %arg10[%c0_12, %c0_13] : memref<2x32xf32, #tpu.memory_space<vmem>>, vector<2x32xf32>
      tpu.vector_store %arg10[%c0_12, %c0_13], %14 {strides = array<i32>} : memref<2x32xf32, #tpu.memory_space<vmem>>, vector<2x32xf32>,
    } else {
    }
    %c0 = arith.constant 0 : index
    %c0_1 = arith.constant 0 : index
    %c0_2 = arith.constant 0 : index
    %3 = vector.load %arg2[%c0, %c0_1, %c0_2] : memref<2x8x32xf32, #tpu.memory_space<vmem>>, vector<2x8x32xf32>
    %c0_3 = arith.constant 0 : index
    %c0_4 = arith.constant 0 : index
    %4 = vector.load %arg3[%c0_3, %c0_4] : memref<2x8xf32, #tpu.memory_space<vmem>>, vector<2x8xf32>
    %5 = vector.shape_cast %4 : vector<2x8xf32> to vector<2x1x8xf32>
    "tpu.trace_start"() <{level = 10 : i32, message = "bks,bsh->bkh"}> : () -> ()
    %cst = arith.constant dense<0.000000e+00> : vector<2x1x32xf32>
    %6 = tpu.matmul %5, %3, %cst {dimension_numbers = #tpu.dot_dimension_numbers<[2], [1], [1], [2], [0, 0, 0, 1, 1, 2], [0], [0]>} : vector<2x1x8xf32>, vector<2x8x32xf32>, vector<2x1x32xf32> -> vector<2x1x32xf32>
    "tpu.trace_stop"() : () -> ()
    %c0_5 = arith.constant 0 : index
    %c0_6 = arith.constant 0 : index
    %7 = vector.load %arg10[%c0_5, %c0_6] : memref<2x32xf32, #tpu.memory_space<vmem>>, vector<2x32xf32>
    %8 = vector.shape_cast %6 : vector<2x1x32xf32> to vector<2x32xf32>
    %9 = arith.addf %7, %8 : vector<2x32xf32>
    %c0_7 = arith.constant 0 : index
    %c0_8 = arith.constant 0 : index
    %10 = vector.load %arg10[%c0_7, %c0_8] : memref<2x32xf32, #tpu.memory_space<vmem>>, vector<2x32xf32>
    tpu.vector_store %arg10[%c0_7, %c0_8], %9 {strides = array<i32>} : memref<2x32xf32, #tpu.memory_space<vmem>>, vector<2x32xf32>,
    %c0_i32_9 = arith.constant 0 : i32
    %11 = arith.cmpi eq, %arg1, %c0_i32_9 : i32
    %12 = arith.extui %11 : i1 to i32
    %c0_i32_10 = arith.constant 0 : i32
    %13 = arith.cmpi ne, %12, %c0_i32_10 : i32
    scf.if %13 {
      %c0_11 = arith.constant 0 : index
      %c0_12 = arith.constant 0 : index
      %14 = vector.load %arg10[%c0_11, %c0_12] : memref<2x32xf32, #tpu.memory_space<vmem>>, vector<2x32xf32>
      %c0_13 = arith.constant 0 : index
      %c0_14 = arith.constant 0 : index
      %15 = vector.load %arg4[%c0_13, %c0_14] : memref<2x1xf32, #tpu.memory_space<vmem>>, vector<2x1xf32>
      %16 = vector.broadcast %15 : vector<2x1xf32> to vector<2x32xf32>
      %17 = arith.mulf %14, %16 : vector<2x32xf32>
      %c0_15 = arith.constant 0 : index
      %c0_16 = arith.constant 0 : index
      %18 = vector.load %arg5[%c0_15, %c0_16] : memref<32x16xf32, #tpu.memory_space<vmem>>, vector<32x16xf32>
      %cst_17 = arith.constant dense<0.000000e+00> : vector<2x16xf32>
      %19 = tpu.matmul %17, %18, %cst_17 {dimension_numbers = #tpu.dot_dimension_numbers<[1], [0], [0], [1], [0, 0, 1, 1], [], []>} : vector<2x32xf32>, vector<32x16xf32>, vector<2x16xf32> -> vector<2x16xf32>
      %c0_18 = arith.constant 0 : index
      %c0_19 = arith.constant 0 : index
      %20 = vector.load %arg6[%c0_18, %c0_19] : memref<1x16xf32, #tpu.memory_space<vmem>>, vector<1x16xf32>
      %21 = vector.broadcast %20 : vector<1x16xf32> to vector<2x16xf32>
      %22 = arith.addf %19, %21 : vector<2x16xf32>
      %cst_20 = arith.constant dense<0.000000e+00> : vector<2xf32>
      %23 = vector.multi_reduction <add>, %22, %cst_20 [1] : vector<2x16xf32> to vector<2xf32>
      %24 = vector.shape_cast %23 : vector<2xf32> to vector<2x1xf32>
      %cst_21 = arith.constant 1.600000e+01 : f32
      %25 = vector.broadcast %cst_21 : f32 to vector<2x1xf32>
      %26 = arith.divf %24, %25 : vector<2x1xf32>
      %27 = vector.broadcast %26 : vector<2x1xf32> to vector<2x16xf32>
      %28 = arith.subf %22, %27 : vector<2x16xf32>
      %29 = arith.mulf %28, %28 : vector<2x16xf32>
      %cst_22 = arith.constant dense<0.000000e+00> : vector<2xf32>
      %30 = vector.multi_reduction <add>, %29, %cst_22 [1] : vector<2x16xf32> to vector<2xf32>
      %31 = vector.shape_cast %30 : vector<2xf32> to vector<2x1xf32>
      %cst_23 = arith.constant 1.600000e+01 : f32
      %32 = vector.broadcast %cst_23 : f32 to vector<2x1xf32>
      %33 = arith.divf %31, %32 : vector<2x1xf32>
      %cst_24 = arith.constant 9.99999996E-13 : f32
      %34 = vector.broadcast %cst_24 : f32 to vector<2x1xf32>
      %35 = arith.addf %33, %34 : vector<2x1xf32>
      %36 = math.rsqrt %35 : vector<2x1xf32>
      %37 = vector.broadcast %36 : vector<2x1xf32> to vector<2x16xf32>
      %38 = arith.mulf %28, %37 : vector<2x16xf32>
      %c0_25 = arith.constant 0 : index
      %c0_26 = arith.constant 0 : index
      %39 = vector.load %arg7[%c0_25, %c0_26] : memref<1x16xf32, #tpu.memory_space<vmem>>, vector<1x16xf32>
      %40 = vector.broadcast %39 : vector<1x16xf32> to vector<2x16xf32>
      %41 = arith.mulf %38, %40 : vector<2x16xf32>
      %c0_27 = arith.constant 0 : index
      %c0_28 = arith.constant 0 : index
      %42 = vector.load %arg8[%c0_27, %c0_28] : memref<1x16xf32, #tpu.memory_space<vmem>>, vector<1x16xf32>
      %43 = vector.broadcast %42 : vector<1x16xf32> to vector<2x16xf32>
      %44 = arith.addf %41, %43 : vector<2x16xf32>
      %c0_29 = arith.constant 0 : index
      %c0_30 = arith.constant 0 : index
      %45 = vector.load %arg9[%c0_29, %c0_30] : memref<2x16xf32, #tpu.memory_space<vmem>>, vector<2x16xf32>
      tpu.vector_store %arg9[%c0_29, %c0_30], %44 {strides = array<i32>} : memref<2x16xf32, #tpu.memory_space<vmem>>, vector<2x16xf32>,
    } else {
    }
    return
  }
  func.func @transform_0(%arg0: i32, %arg1: i32) -> (i32, i32, i32) {
    %c0_i32 = arith.constant 0 : i32
    %c0_i32_0 = arith.constant 0 : i32
    return %arg0, %arg1, %c0_i32 : i32, i32, i32
  }
  func.func @transform_1(%arg0: i32, %arg1: i32) -> (i32, i32) {
    %c0_i32 = arith.constant 0 : i32
    return %arg0, %arg1 : i32, i32
  }
  func.func @transform_2(%arg0: i32, %arg1: i32) -> (i32, i32) {
    %c0_i32 = arith.constant 0 : i32
    %c0_i32_0 = arith.constant 0 : i32
    return %arg0, %c0_i32 : i32, i32
  }
  func.func @transform_3(%arg0: i32, %arg1: i32) -> (i32, i32) {
    %c0_i32 = arith.constant 0 : i32
    %c0_i32_0 = arith.constant 0 : i32
    %c0_i32_1 = arith.constant 0 : i32
    return %c0_i32, %c0_i32_0 : i32, i32
  }
  func.func @transform_4(%arg0: i32, %arg1: i32) -> (i32, i32) {
    %c0_i32 = arith.constant 0 : i32
    %c0_i32_0 = arith.constant 0 : i32
    %c0_i32_1 = arith.constant 0 : i32
    return %c0_i32, %c0_i32_0 : i32, i32
  }
  func.func @transform_5(%arg0: i32, %arg1: i32) -> (i32, i32) {
    %c0_i32 = arith.constant 0 : i32
    %c0_i32_0 = arith.constant 0 : i32
    %c0_i32_1 = arith.constant 0 : i32
    return %c0_i32, %c0_i32_0 : i32, i32
  }
  func.func @transform_6(%arg0: i32, %arg1: i32) -> (i32, i32) {
    %c0_i32 = arith.constant 0 : i32
    %c0_i32_0 = arith.constant 0 : i32
    %c0_i32_1 = arith.constant 0 : i32
    return %c0_i32, %c0_i32_0 : i32, i32
  }
  func.func @transform_7(%arg0: i32, %arg1: i32) -> (i32, i32) {
    %c0_i32 = arith.constant 0 : i32
    %c0_i32_0 = arith.constant 0 : i32
    return %arg0, %c0_i32 : i32, i32
  }
}

module attributes {stable_mosaic.version = 11 : i64} {
  func.func @_mean_reducer_kernel(%arg0: i32, %arg1: i32, %arg2: memref<2x8x32xf32, #tpu.memory_space<vmem>>, %arg3: memref<2x8xf32, #tpu.memory_space<vmem>>, %arg4: memref<2x1xf32, #tpu.memory_space<vmem>>, %arg5: memref<32x16xf32, #tpu.memory_space<vmem>>, %arg6: memref<1x16xf32, #tpu.memory_space<vmem>>, %arg7: memref<1x16xf32, #tpu.memory_space<vmem>>, %arg8: memref<1x16xf32, #tpu.memory_space<vmem>>, %arg9: memref<2x16xf32, #tpu.memory_space<vmem>>, %arg10: memref<2x32xf32, #tpu.memory_space<vmem>>) attributes {dimension_semantics = [#tpu.dimension_semantics<parallel>, #tpu.dimension_semantics<arbitrary>], iteration_bounds = array<i64: 1, 1>, scalar_prefetch = 0 : i64, scratch_operands = 1 : i64, tpu.core_type = #tpu.core_type<tc>, window_params = [{transform_indices = @transform_0, window_bounds = array<i64: 2, 8, 32>}, {transform_indices = @transform_1, window_bounds = array<i64: 2, 8>}, {transform_indices = @transform_2, window_bounds = array<i64: 2, 1>}, {pipeline_mode = #tpu.pipeline_mode<synchronous>, transform_indices = @transform_3, window_bounds = array<i64: 32, 16>}, {pipeline_mode = #tpu.pipeline_mode<synchronous>, transform_indices = @transform_4, window_bounds = array<i64: 1, 16>}, {pipeline_mode = #tpu.pipeline_mode<synchronous>, transform_indices = @transform_5, window_bounds = array<i64: 1, 16>}, {pipeline_mode = #tpu.pipeline_mode<synchronous>, transform_indices = @transform_6, window_bounds = array<i64: 1, 16>}, {transform_indices = @transform_7, window_bounds = array<i64: 2, 16>}]} {
    %c0_i32 = arith.constant 0 : i32
    %0 = arith.cmpi eq, %arg1, %c0_i32 : i32
    %1 = arith.extui %0 : i1 to i32
    %c0_i32_0 = arith.constant 0 : i32
    %2 = arith.cmpi ne, %1, %c0_i32_0 : i32
    scf.if %2 {
      %cst_11 = arith.constant 0.000000e+00 : f32
      %14 = vector.broadcast %cst_11 : f32 to vector<2x32xf32>
      %c0_12 = arith.constant 0 : index
      %c0_13 = arith.constant 0 : index
      %15 = vector.load %arg10[%c0_12, %c0_13] : memref<2x32xf32, #tpu.memory_space<vmem>>, vector<2x32xf32>
      tpu.vector_store %arg10[%c0_12, %c0_13], %14 {strides = array<i32>} : memref<2x32xf32, #tpu.memory_space<vmem>>, vector<2x32xf32>,
    } else {
    }
    %c0 = arith.constant 0 : index
    %c0_1 = arith.constant 0 : index
    %c0_2 = arith.constant 0 : index
    %3 = vector.load %arg2[%c0, %c0_1, %c0_2] : memref<2x8x32xf32, #tpu.memory_space<vmem>>, vector<2x8x32xf32>
    %c0_3 = arith.constant 0 : index
    %c0_4 = arith.constant 0 : index
    %4 = vector.load %arg3[%c0_3, %c0_4] : memref<2x8xf32, #tpu.memory_space<vmem>>, vector<2x8xf32>
    %5 = vector.shape_cast %4 : vector<2x8xf32> to vector<2x1x8xf32>
    "tpu.trace_start"() <{level = 10 : i32, message = "bks,bsh->bkh"}> : () -> ()
    %cst = arith.constant dense<0.000000e+00> : vector<2x1x32xf32>
    %6 = tpu.matmul %5, %3, %cst {dimension_numbers = #tpu.dot_dimension_numbers<[2], [1], [1], [2], [0, 0, 0, 1, 1, 2], [0], [0]>} : vector<2x1x8xf32>, vector<2x8x32xf32>, vector<2x1x32xf32> -> vector<2x1x32xf32>
    "tpu.trace_stop"() : () -> ()
    %c0_5 = arith.constant 0 : index
    %c0_6 = arith.constant 0 : index
    %7 = vector.load %arg10[%c0_5, %c0_6] : memref<2x32xf32, #tpu.memory_space<vmem>>, vector<2x32xf32>
    %8 = vector.shape_cast %6 : vector<2x1x32xf32> to vector<2x32xf32>
    %9 = arith.addf %7, %8 : vector<2x32xf32>
    %c0_7 = arith.constant 0 : index
    %c0_8 = arith.constant 0 : index
    %10 = vector.load %arg10[%c0_7, %c0_8] : memref<2x32xf32, #tpu.memory_space<vmem>>, vector<2x32xf32>
    tpu.vector_store %arg10[%c0_7, %c0_8], %9 {strides = array<i32>} : memref<2x32xf32, #tpu.memory_space<vmem>>, vector<2x32xf32>,
    %c0_i32_9 = arith.constant 0 : i32
    %11 = arith.cmpi eq, %arg1, %c0_i32_9 : i32
    %12 = arith.extui %11 : i1 to i32
    %c0_i32_10 = arith.constant 0 : i32
    %13 = arith.cmpi ne, %12, %c0_i32_10 : i32
    scf.if %13 {
      %c0_11 = arith.constant 0 : index
      %c0_12 = arith.constant 0 : index
      %14 = vector.load %arg10[%c0_11, %c0_12] : memref<2x32xf32, #tpu.memory_space<vmem>>, vector<2x32xf32>
      %c0_13 = arith.constant 0 : index
      %c0_14 = arith.constant 0 : index
      %15 = vector.load %arg4[%c0_13, %c0_14] : memref<2x1xf32, #tpu.memory_space<vmem>>, vector<2x1xf32>
      %16 = vector.broadcast %15 : vector<2x1xf32> to vector<2x32xf32>
      %17 = arith.mulf %14, %16 : vector<2x32xf32>
      %c0_15 = arith.constant 0 : index
      %c0_16 = arith.constant 0 : index
      %18 = vector.load %arg5[%c0_15, %c0_16] : memref<32x16xf32, #tpu.memory_space<vmem>>, vector<32x16xf32>
      %cst_17 = arith.constant dense<0.000000e+00> : vector<2x16xf32>
      %19 = tpu.matmul %17, %18, %cst_17 {dimension_numbers = #tpu.dot_dimension_numbers<[1], [0], [0], [1], [0, 0, 1, 1], [], []>} : vector<2x32xf32>, vector<32x16xf32>, vector<2x16xf32> -> vector<2x16xf32>
      %c0_18 = arith.constant 0 : index
      %c0_19 = arith.constant 0 : index
      %20 = vector.load %arg6[%c0_18, %c0_19] : memref<1x16xf32, #tpu.memory_space<vmem>>, vector<1x16xf32>
      %21 = vector.broadcast %20 : vector<1x16xf32> to vector<2x16xf32>
      %22 = arith.addf %19, %21 : vector<2x16xf32>
      %cst_20 = arith.constant dense<0.000000e+00> : vector<2xf32>
      %23 = vector.multi_reduction <add>, %22, %cst_20 [1] : vector<2x16xf32> to vector<2xf32>
      %24 = vector.shape_cast %23 : vector<2xf32> to vector<2x1xf32>
      %cst_21 = arith.constant 1.600000e+01 : f32
      %25 = vector.broadcast %cst_21 : f32 to vector<2x1xf32>
      %26 = arith.divf %24, %25 : vector<2x1xf32>
      %27 = vector.broadcast %26 : vector<2x1xf32> to vector<2x16xf32>
      %28 = arith.subf %22, %27 : vector<2x16xf32>
      %29 = arith.mulf %28, %28 : vector<2x16xf32>
      %cst_22 = arith.constant dense<0.000000e+00> : vector<2xf32>
      %30 = vector.multi_reduction <add>, %29, %cst_22 [1] : vector<2x16xf32> to vector<2xf32>
      %31 = vector.shape_cast %30 : vector<2xf32> to vector<2x1xf32>
      %cst_23 = arith.constant 1.600000e+01 : f32
      %32 = vector.broadcast %cst_23 : f32 to vector<2x1xf32>
      %33 = arith.divf %31, %32 : vector<2x1xf32>
      %cst_24 = arith.constant 9.99999996E-13 : f32
      %34 = vector.broadcast %cst_24 : f32 to vector<2x1xf32>
      %35 = arith.addf %33, %34 : vector<2x1xf32>
      %36 = math.rsqrt %35 : vector<2x1xf32>
      %37 = vector.broadcast %36 : vector<2x1xf32> to vector<2x16xf32>
      %38 = arith.mulf %28, %37 : vector<2x16xf32>
      %c0_25 = arith.constant 0 : index
      %c0_26 = arith.constant 0 : index
      %39 = vector.load %arg7[%c0_25, %c0_26] : memref<1x16xf32, #tpu.memory_space<vmem>>, vector<1x16xf32>
      %40 = vector.broadcast %39 : vector<1x16xf32> to vector<2x16xf32>
      %41 = arith.mulf %38, %40 : vector<2x16xf32>
      %c0_27 = arith.constant 0 : index
      %c0_28 = arith.constant 0 : index
      %42 = vector.load %arg8[%c0_27, %c0_28] : memref<1x16xf32, #tpu.memory_space<vmem>>, vector<1x16xf32>
      %43 = vector.broadcast %42 : vector<1x16xf32> to vector<2x16xf32>
      %44 = arith.addf %41, %43 : vector<2x16xf32>
      %c0_29 = arith.constant 0 : index
      %c0_30 = arith.constant 0 : index
      %45 = vector.load %arg9[%c0_29, %c0_30] : memref<2x16xf32, #tpu.memory_space<vmem>>, vector<2x16xf32>
      tpu.vector_store %arg9[%c0_29, %c0_30], %44 {strides = array<i32>} : memref<2x16xf32, #tpu.memory_space<vmem>>, vector<2x16xf32>,
    } else {
    }
    return
  }
  func.func @transform_0(%arg0: i32, %arg1: i32) -> (i32, i32, i32) {
    %c0_i32 = arith.constant 0 : i32
    %c0_i32_0 = arith.constant 0 : i32
    return %arg0, %arg1, %c0_i32 : i32, i32, i32
  }
  func.func @transform_1(%arg0: i32, %arg1: i32) -> (i32, i32) {
    %c0_i32 = arith.constant 0 : i32
    return %arg0, %arg1 : i32, i32
  }
  func.func @transform_2(%arg0: i32, %arg1: i32) -> (i32, i32) {
    %c0_i32 = arith.constant 0 : i32
    %c0_i32_0 = arith.constant 0 : i32
    return %arg0, %c0_i32 : i32, i32
  }
  func.func @transform_3(%arg0: i32, %arg1: i32) -> (i32, i32) {
    %c0_i32 = arith.constant 0 : i32
    %c0_i32_0 = arith.constant 0 : i32
    %c0_i32_1 = arith.constant 0 : i32
    return %c0_i32, %c0_i32_0 : i32, i32
  }
  func.func @transform_4(%arg0: i32, %arg1: i32) -> (i32, i32) {
    %c0_i32 = arith.constant 0 : i32
    %c0_i32_0 = arith.constant 0 : i32
    %c0_i32_1 = arith.constant 0 : i32
    return %c0_i32, %c0_i32_0 : i32, i32
  }
  func.func @transform_5(%arg0: i32, %arg1: i32) -> (i32, i32) {
    %c0_i32 = arith.constant 0 : i32
    %c0_i32_0 = arith.constant 0 : i32
    %c0_i32_1 = arith.constant 0 : i32
    return %c0_i32, %c0_i32_0 : i32, i32
  }
  func.func @transform_6(%arg0: i32, %arg1: i32) -> (i32, i32) {
    %c0_i32 = arith.constant 0 : i32
    %c0_i32_0 = arith.constant 0 : i32
    %c0_i32_1 = arith.constant 0 : i32
    return %c0_i32, %c0_i32_0 : i32, i32
  }
  func.func @transform_7(%arg0: i32, %arg1: i32) -> (i32, i32) {
    %c0_i32 = arith.constant 0 : i32
    %c0_i32_0 = arith.constant 0 : i32
    return %arg0, %c0_i32 : i32, i32
  }
}

</mosaic_0001>

<llo_original>
// kernel: tpu_custom_call.1
$region0: #{tpu_custom_call.1}
  #allocation0 [shape = 'u32[]', space=smem, size = 0x4, offset = 0x4, fixed_abs, tag = 'smem constant byte address 0x4 - core index']
  #allocation1 [shape = 'u32[144,128]{1,0:T(1,128)}', space=vmem, size = 0x12000, scoped, tag = 'internal scratch']
  #allocation2 [shape = 'f32[2,32]{1,0:T(2,128)}', space=vmem, size = 0x400, scoped, tag = 'scratch operand']
  %s0 = inlined_call_operand.vmem [shape: f32[2,8,32], index: 0, kind: input, shape index: {}]
  %s1 = inlined_call_operand.vmem [shape: f32[2,8], index: 1, kind: input, shape index: {}]
  %s2 = inlined_call_operand.vmem [shape: f32[2,1], index: 2, kind: input, shape index: {}]
  %s3 = inlined_call_operand.vmem [shape: f32[32,16], index: 3, kind: input, shape index: {}]
  %s4 = inlined_call_operand.vmem [shape: f32[1,16], index: 4, kind: input, shape index: {}]
  %s5 = inlined_call_operand.vmem [shape: f32[1,16], index: 5, kind: input, shape index: {}]
  %s6 = inlined_call_operand.vmem [shape: f32[1,16], index: 6, kind: input, shape index: {}]
  %s7 = inlined_call_operand.hbm [shape: f32[2,16], index: 7, kind: output, shape index: {}]
  %s8 = sld [smem:[#allocation0]]
  $region46: #{tpu_custom_call.1} parent=0
    _
  %s10 = ssub.s32 1, %s8
  %s11 = scalar_select 0, %s10, %s8
  $region1: #{tpu_custom_call.1} parent=0
    #allocation3 [shape = 'u8[1024]{0}', space=vmem, size = 0x400, scoped, tag = 'output window, operand 0, single buffered']
    #allocation4 [shape = 's32[1]{0}', space=sflag, size = 0x4, scoped, tag = 'scoped memory for tpu_custom_call.1']
    %12 = vsyncpa [#allocation4], 0
    // Predicated region
    $region2: #{tpu_custom_call.1} parent=1 // pred_check
      _
    $region3: #{tpu_custom_call.1} parent=1 // pred_check_branch
      %14 = sbr.rel (0) target = $region5
    $region4: #{tpu_custom_call.1} parent=1 // pred_region
      _
    $region5: #{tpu_custom_call.1} parent=1 // pred_fallthru
      _
    // Predicated region
    $region6: #{tpu_custom_call.1} parent=1 // pred_check
      _
    $region7: #{tpu_custom_call.1} parent=1 // pred_check_branch
      %16 = sbr.rel (0) target = $region9
    $region8: #{tpu_custom_call.1} parent=1 // pred_region
      _
    $region9: #{tpu_custom_call.1} parent=1 // pred_fallthru
      _
    // Predicated region
    $region10: #{tpu_custom_call.1} parent=1 // pred_check
      _
    $region11: #{tpu_custom_call.1} parent=1 // pred_check_branch
      %18 = sbr.rel (0) target = $region13
    $region12: #{tpu_custom_call.1} parent=1 // pred_region
      _
    $region13: #{tpu_custom_call.1} parent=1 // pred_fallthru
      _
    // Predicated region
    $region14: #{tpu_custom_call.1} parent=1 // pred_check
      _
    $region15: #{tpu_custom_call.1} parent=1 // pred_check_branch
      %20 = sbr.rel (0) target = $region17
    $region16: #{tpu_custom_call.1} parent=1 // pred_region
      _
    $region17: #{tpu_custom_call.1} parent=1 // pred_fallthru
      _
    // Predicated region
    $region18: #{tpu_custom_call.1} parent=1 // pred_check
      _
    $region19: #{tpu_custom_call.1} parent=1 // pred_check_branch
      %22 = sbr.rel (0) target = $region21
    $region20: #{tpu_custom_call.1} parent=1 // pred_region
      _
    $region21: #{tpu_custom_call.1} parent=1 // pred_fallthru
      _
    // Predicated region
    $region22: #{tpu_custom_call.1} parent=1 // pred_check
      _
    $region23: #{tpu_custom_call.1} parent=1 // pred_check_branch
      %24 = sbr.rel (0) target = $region25
    $region24: #{tpu_custom_call.1} parent=1 // pred_region
      _
    $region25: #{tpu_custom_call.1} parent=1 // pred_fallthru
      _
    // Predicated region
    $region26: #{tpu_custom_call.1} parent=1 // pred_check
      _
    $region27: #{tpu_custom_call.1} parent=1 // pred_check_branch
      %26 = sbr.rel (0) target = $region29
    $region28: #{tpu_custom_call.1} parent=1 // pred_region
      _
    $region29: #{tpu_custom_call.1} parent=1 // pred_fallthru
      _
    %p27 = scmp.eq.s32.totalorder 0, 0
    // Predicated region
    $region30: #{tpu_custom_call.1} parent=1 // pred_check
      %p28 = pneg %p27
    $region31: #{tpu_custom_call.1} parent=1 // pred_check_branch
      %30 = sbr.rel (%p28) target = $region33
    $region32: #{tpu_custom_call.1} parent=1 // pred_region
      %vm31 = vcmask 254976
      %32 = vst.msk [vmem:[#allocation2] sm:$0x3] %vm31, 0.0
    $region33: #{tpu_custom_call.1} parent=1 // pred_fallthru
      _
    %v33 = vld [vmem:[%s0] sm:$0xff]
    %v34 = vld [vmem:[%s0 + $0x8] sm:$0xff]
    %v35 = vld [vmem:[%s1] sm:$0x3]
    %v38 = vunpack.c.l.s4 1966171168
    %v39 = vunpack.c.0.s8 %v38
    %v40 = vlaneseq
    %v41 = vshrl.u32 %v40, 7
    %v42 = vsub.s32 %v39, %v41
    %v43 = vrot.slane %v35, %v42
    %v44 = vcombine.high %v43, %v43
    %v46 = vunpack.c.l.s4 1966171168
    %v47 = vunpack.c.0.s8 %v46
    %v48 = vlaneseq
    %v49 = vshrl.u32 %v48, 7
    %v50 = vsub.s32 %v47, %v49
    %v51 = vrot.slane %v43, %v50
    %v53 = vunpack.c.l.s4 1966171168
    %v54 = vunpack.c.0.s8 %v53
    %v55 = vlaneseq
    %v56 = vshrl.u32 %v55, 7
    %v57 = vsub.s32 %v54, %v56
    %v58 = vrot.slane %v44, %v57
    %vm59 = vcmask 64512
    %v60 = vsel %vm59, %v51, 0
    %62 = vmatprep.subr.mxu0 0.0
    %63 = vmatpush1.msra.mxu0 0.0
    %64 = vmatprep.subr.mxu0 0.0
    %65 = vmatpush1.msra.mxu0 0.0
    %66 = vmatprep.subr.mxu0 0.0
    %67 = vmatpush1.msra.mxu0 0.0
    %68 = vmatprep.subr.mxu0 0.0
    %69 = vmatpush1.msra.mxu0 0.0
    %70 = vmatprep.subr.mxu0 0.0
    %71 = vmatpush1.msra.mxu0 0.0
    %72 = vmatprep.subr.mxu0 0.0
    %73 = vmatpush1.msra.mxu0 0.0
    %74 = vmatprep.subr.mxu0 0.0
    %75 = vmatpush1.msra.mxu0 0.0
    %76 = vmatprep.subr.mxu0 0.0
    %77 = vmatpush1.msra.mxu0 0.0
    %78 = vmatprep.subr.mxu0 0.0
    %79 = vmatpush1.msra.mxu0 0.0
    %80 = vmatprep.subr.mxu0 0.0
    %81 = vmatpush1.msra.mxu0 0.0
    %82 = vmatprep.subr.mxu0 0.0
    %83 = vmatpush1.msra.mxu0 0.0
    %84 = vmatprep.subr.mxu0 0.0
    %85 = vmatpush1.msra.mxu0 0.0
    %86 = vmatprep.subr.mxu0 0.0
    %87 = vmatpush1.msra.mxu0 0.0
    %88 = vmatprep.subr.mxu0 0.0
    %89 = vmatpush1.msra.mxu0 0.0
    %90 = vmatprep.subr.mxu0 0.0
    %91 = vmatpush1.msra.mxu0 0.0
    %92 = vmatprep.subr.mxu0 0.0
    %93 = vmatpush1.msra.mxu0 %v33
    %94 = vmatprep.subr.mxu0 0.0
    %95 = vmatpush2.msra.mxu0 0.0
    %96 = vmatprep.subr.mxu0 0.0
    %97 = vmatpush2.msra.mxu0 0.0
    %98 = vmatprep.subr.mxu0 0.0
    %99 = vmatpush2.msra.mxu0 0.0
    %100 = vmatprep.subr.mxu0 0.0
    %101 = vmatpush2.msra.mxu0 0.0
    %102 = vmatprep.subr.mxu0 0.0
    %103 = vmatpush2.msra.mxu0 0.0
    %104 = vmatprep.subr.mxu0 0.0
    %105 = vmatpush2.msra.mxu0 0.0
    %106 = vmatprep.subr.mxu0 0.0
    %107 = vmatpush2.msra.mxu0 0.0
    %108 = vmatprep.subr.mxu0 0.0
    %109 = vmatpush2.msra.mxu0 0.0
    %110 = vmatprep.subr.mxu0 0.0
    %111 = vmatpush2.msra.mxu0 0.0
    %112 = vmatprep.subr.mxu0 0.0
    %113 = vmatpush2.msra.mxu0 0.0
    %114 = vmatprep.subr.mxu0 0.0
    %115 = vmatpush2.msra.mxu0 0.0
    %116 = vmatprep.subr.mxu0 0.0
    %117 = vmatpush2.msra.mxu0 0.0
    %118 = vmatprep.subr.mxu0 0.0
    %119 = vmatpush2.msra.mxu0 0.0
    %120 = vmatprep.subr.mxu0 0.0
    %121 = vmatpush2.msra.mxu0 0.0
    %122 = vmatprep.subr.mxu0 0.0
    %123 = vmatpush2.msra.mxu0 0.0
    %124 = vmatprep.subr.mxu0 0.0
    %125 = vmatpush2.msra.mxu0 0.0
    %126 = vmatprep.mubr.f32.mxu0 0.0
    %127 = vmatmul.mubr.f32.gmra.mxu0 %v60
    %v128 = vpop.f32.mrf.mxu0
    %v129 = vadd.f32 0.0, %v128
    %v130 = vpop.f32.mrf.mxu0
    %131 = vdwg.mxu0
    %v132 = vsel %vm59, %v58, 0
    %134 = vmatprep.subr.mxu0 0.0
    %135 = vmatpush1.msra.mxu0 0.0
    %136 = vmatprep.subr.mxu0 0.0
    %137 = vmatpush1.msra.mxu0 0.0
    %138 = vmatprep.subr.mxu0 0.0
    %139 = vmatpush1.msra.mxu0 0.0
    %140 = vmatprep.subr.mxu0 0.0
    %141 = vmatpush1.msra.mxu0 0.0
    %142 = vmatprep.subr.mxu0 0.0
    %143 = vmatpush1.msra.mxu0 0.0
    %144 = vmatprep.subr.mxu0 0.0
    %145 = vmatpush1.msra.mxu0 0.0
    %146 = vmatprep.subr.mxu0 0.0
    %147 = vmatpush1.msra.mxu0 0.0
    %148 = vmatprep.subr.mxu0 0.0
    %149 = vmatpush1.msra.mxu0 0.0
    %150 = vmatprep.subr.mxu0 0.0
    %151 = vmatpush1.msra.mxu0 0.0
    %152 = vmatprep.subr.mxu0 0.0
    %153 = vmatpush1.msra.mxu0 0.0
    %154 = vmatprep.subr.mxu0 0.0
    %155 = vmatpush1.msra.mxu0 0.0
    %156 = vmatprep.subr.mxu0 0.0
    %157 = vmatpush1.msra.mxu0 0.0
    %158 = vmatprep.subr.mxu0 0.0
    %159 = vmatpush1.msra.mxu0 0.0
    %160 = vmatprep.subr.mxu0 0.0
    %161 = vmatpush1.msra.mxu0 0.0
    %162 = vmatprep.subr.mxu0 0.0
    %163 = vmatpush1.msra.mxu0 0.0
    %164 = vmatprep.subr.mxu0 0.0
    %165 = vmatpush1.msra.mxu0 %v34
    %166 = vmatprep.subr.mxu0 0.0
    %167 = vmatpush2.msra.mxu0 0.0
    %168 = vmatprep.subr.mxu0 0.0
    %169 = vmatpush2.msra.mxu0 0.0
    %170 = vmatprep.subr.mxu0 0.0
    %171 = vmatpush2.msra.mxu0 0.0
    %172 = vmatprep.subr.mxu0 0.0
    %173 = vmatpush2.msra.mxu0 0.0
    %174 = vmatprep.subr.mxu0 0.0
    %175 = vmatpush2.msra.mxu0 0.0
    %176 = vmatprep.subr.mxu0 0.0
    %177 = vmatpush2.msra.mxu0 0.0
    %178 = vmatprep.subr.mxu0 0.0
    %179 = vmatpush2.msra.mxu0 0.0
    %180 = vmatprep.subr.mxu0 0.0
    %181 = vmatpush2.msra.mxu0 0.0
    %182 = vmatprep.subr.mxu0 0.0
    %183 = vmatpush2.msra.mxu0 0.0
    %184 = vmatprep.subr.mxu0 0.0
    %185 = vmatpush2.msra.mxu0 0.0
    %186 = vmatprep.subr.mxu0 0.0
    %187 = vmatpush2.msra.mxu0 0.0
    %188 = vmatprep.subr.mxu0 0.0
    %189 = vmatpush2.msra.mxu0 0.0
    %190 = vmatprep.subr.mxu0 0.0
    %191 = vmatpush2.msra.mxu0 0.0
    %192 = vmatprep.subr.mxu0 0.0
    %193 = vmatpush2.msra.mxu0 0.0
    %194 = vmatprep.subr.mxu0 0.0
    %195 = vmatpush2.msra.mxu0 0.0
    %196 = vmatprep.subr.mxu0 0.0
    %197 = vmatpush2.msra.mxu0 0.0
    %198 = vmatprep.mubr.f32.mxu0 0.0
    %199 = vmatmul.mubr.f32.gmra.mxu0 %v132
    %v200 = vpop.f32.mrf.mxu0
    %v201 = vadd.f32 0.0, %v200
    %v202 = vpop.f32.mrf.mxu0
    %203 = vdwg.mxu0
    %v204 = vld [vmem:[#allocation2] sm:$0x3]
    %v207 = vrot.slane %v201, 7
    %vm208 = vcmask 1041409
    %v209 = vsel %vm208, %v207, %v129
    %v211 = vadd.f32 %v204, %v209
    %vm212 = vcmask 254976
    %213 = vst.msk [vmem:[#allocation2] sm:$0x3] %vm212, %v211
    // Predicated region
    $region34: #{tpu_custom_call.1} parent=1 // pred_check
      %p214 = pneg %p27
    $region35: #{tpu_custom_call.1} parent=1 // pred_check_branch
      %216 = sbr.rel (%p214) target = $region37
    $region36: #{tpu_custom_call.1} parent=1 // pred_region
      %v217 = vld [vmem:[#allocation2] sm:$0x3]
      %v218 = vld [vmem:[%s2] sm:$0x3]
      %220 = vset.pattern.permute.xlu0 0
      %221 = vperm.xlu0 %220, %v218
      %v222 = vpop.permute.xlu0 %221
      %v224 = vmul.f32 %v217, %v222
      %v225 = vld [vmem:[%s3] sm:$0xff]
      %v226 = vld [vmem:[%s3 + $0x8] sm:$0xff]
      %v227 = vld [vmem:[%s3 + $0x10] sm:$0xff]
      %v228 = vld [vmem:[%s3 + $0x18] sm:$0xff]
      %v229 = vld [vmem:[%s4] sm:$0x1]
      %v231 = vlaneseq
      %v232 = vshrl.u32 %v231, 7
      %v233 = vsub.s32 0, %v232
      %v234 = vrot.slane %v229, %v233
      %vm236 = vcmask 261120
      %v238 = vsel %vm236, %v224, 0
      %240 = vmatprep.subr.mxu0 0.0
      %241 = vmatpush1.msra.mxu0 0.0
      %242 = vmatprep.subr.mxu0 0.0
      %243 = vmatpush1.msra.mxu0 0.0
      %244 = vmatprep.subr.mxu0 0.0
      %245 = vmatpush1.msra.mxu0 0.0
      %246 = vmatprep.subr.mxu0 0.0
      %247 = vmatpush1.msra.mxu0 0.0
      %248 = vmatprep.subr.mxu0 0.0
      %249 = vmatpush1.msra.mxu0 0.0
      %250 = vmatprep.subr.mxu0 0.0
      %251 = vmatpush1.msra.mxu0 0.0
      %252 = vmatprep.subr.mxu0 0.0
      %253 = vmatpush1.msra.mxu0 0.0
      %254 = vmatprep.subr.mxu0 0.0
      %255 = vmatpush1.msra.mxu0 0.0
      %256 = vmatprep.subr.mxu0 0.0
      %257 = vmatpush1.msra.mxu0 0.0
      %258 = vmatprep.subr.mxu0 0.0
      %259 = vmatpush1.msra.mxu0 0.0
      %260 = vmatprep.subr.mxu0 0.0
      %261 = vmatpush1.msra.mxu0 0.0
      %262 = vmatprep.subr.mxu0 0.0
      %263 = vmatpush1.msra.mxu0 0.0
      %264 = vmatprep.subr.mxu0 0.0
      %265 = vmatpush1.msra.mxu0 %v228
      %266 = vmatprep.subr.mxu0 0.0
      %267 = vmatpush1.msra.mxu0 %v227
      %268 = vmatprep.subr.mxu0 0.0
      %269 = vmatpush1.msra.mxu0 %v226
      %270 = vmatprep.subr.mxu0 0.0
      %271 = vmatpush1.msra.mxu0 %v225
      %272 = vmatprep.subr.mxu0 0.0
      %273 = vmatpush2.msra.mxu0 0.0
      %274 = vmatprep.subr.mxu0 0.0
      %275 = vmatpush2.msra.mxu0 0.0
      %276 = vmatprep.subr.mxu0 0.0
      %277 = vmatpush2.msra.mxu0 0.0
      %278 = vmatprep.subr.mxu0 0.0
      %279 = vmatpush2.msra.mxu0 0.0
      %280 = vmatprep.subr.mxu0 0.0
      %281 = vmatpush2.msra.mxu0 0.0
      %282 = vmatprep.subr.mxu0 0.0
      %283 = vmatpush2.msra.mxu0 0.0
      %284 = vmatprep.subr.mxu0 0.0
      %285 = vmatpush2.msra.mxu0 0.0
      %286 = vmatprep.subr.mxu0 0.0
      %287 = vmatpush2.msra.mxu0 0.0
      %288 = vmatprep.subr.mxu0 0.0
      %289 = vmatpush2.msra.mxu0 0.0
      %290 = vmatprep.subr.mxu0 0.0
      %291 = vmatpush2.msra.mxu0 0.0
      %292 = vmatprep.subr.mxu0 0.0
      %293 = vmatpush2.msra.mxu0 0.0
      %294 = vmatprep.subr.mxu0 0.0
      %295 = vmatpush2.msra.mxu0 0.0
      %296 = vmatprep.subr.mxu0 0.0
      %297 = vmatpush2.msra.mxu0 0.0
      %298 = vmatprep.subr.mxu0 0.0
      %299 = vmatpush2.msra.mxu0 0.0
      %300 = vmatprep.subr.mxu0 0.0
      %301 = vmatpush2.msra.mxu0 0.0
      %302 = vmatprep.subr.mxu0 0.0
      %303 = vmatpush2.msra.mxu0 0.0
      %304 = vmatprep.mubr.f32.mxu0 0.0
      %305 = vmatmul.mubr.f32.gmra.mxu0 %v238
      %v306 = vpop.f32.mrf.mxu0
      %v307 = vadd.f32 %v234, %v306
      %v308 = vpop.f32.mrf.mxu0
      %309 = vdwg.mxu0
      %vm310 = vcmask 123904
      %v311 = vsel %vm310, %v307, 0.0
      %312 = vadd.xlane.f32.xlu0 %v311
      %v313 = vpop.xlane.xlu0 %312
      %v314 = vrcp.pop 16.0
      %v315 = vmul.f32 %v313, %v314
      %v316 = vsub.f32 %v307, %v315
      %v317 = vmul.f32 %v316, %v316
      %v318 = vsel %vm310, %v317, 0.0
      %319 = vadd.xlane.f32.xlu0 %v318
      %v320 = vpop.xlane.xlu0 %319
      %v321 = vmul.f32 %v320, %v314
      %v322 = vadd.f32 %v321, 1e-12
      %v323 = vrsqrt.pop %v322
      %v324 = vmul.f32 %v316, %v323
      %v325 = vld [vmem:[%s5] sm:$0x1]
      %v327 = vlaneseq
      %v328 = vshrl.u32 %v327, 7
      %v329 = vsub.s32 0, %v328
      %v330 = vrot.slane %v325, %v329
      %v332 = vmul.f32 %v324, %v330
      %v333 = vld [vmem:[%s6] sm:$0x1]
      %v335 = vlaneseq
      %v336 = vshrl.u32 %v335, 7
      %v337 = vsub.s32 0, %v336
      %v338 = vrot.slane %v333, %v337
      %v340 = vadd.f32 %v332, %v338
      %341 = vst.msk [vmem:[#allocation3] sm:$0x3] %vm310, %v340
    $region37: #{tpu_custom_call.1} parent=1 // pred_fallthru
      _
    // Predicated region
    $region38: #{tpu_custom_call.1} parent=1 // pred_check
      _
    $region39: #{tpu_custom_call.1} parent=1 // pred_check_branch
      %343 = sbr.rel (0) target = $region41
    $region40: #{tpu_custom_call.1} parent=1 // pred_region
      %s345 = ssub.s32 32, 32
      %346 = vsyncadd [#allocation4], %s345
      %s348 = sshll.u32 [#allocation3], 4
      %s349 = int_to_ptr.vmem [resolvable:$true] %s348
      %351 = dma.vmem_to_hbm [thread:$0]  %s349, 32, %s7, [#allocation4]
    $region41: #{tpu_custom_call.1} parent=1 // pred_fallthru
      _
    // Predicated region
    $region42: #{tpu_custom_call.1} parent=1 // pred_check
      _
    $region43: #{tpu_custom_call.1} parent=1 // pred_check_branch
      %353 = sbr.rel (0) target = $region45
    $region44: #{tpu_custom_call.1} parent=1 // pred_region
      %354 = dma.done [#allocation4], 32
    $region45: #{tpu_custom_call.1} parent=1 // pred_fallthru
      _
    %355 = vsyncpa [#allocation4], 1

// kernel: tpu_custom_call.1
$region0: #{tpu_custom_call.1}
  #allocation0 [shape = 'u32[]', space=smem, size = 0x4, offset = 0x4, fixed_abs, tag = 'smem constant byte address 0x4 - core index']
  #allocation1 [shape = 'u32[144,128]{1,0:T(1,128)}', space=vmem, size = 0x12000, scoped, tag = 'internal scratch']
  #allocation2 [shape = 'f32[2,32]{1,0:T(2,128)}', space=vmem, size = 0x400, scoped, tag = 'scratch operand']
  %s0 = inlined_call_operand.vmem [shape: f32[2,8,32], index: 0, kind: input, shape index: {}]
  %s1 = inlined_call_operand.vmem [shape: f32[2,8], index: 1, kind: input, shape index: {}]
  %s2 = inlined_call_operand.vmem [shape: f32[2,1], index: 2, kind: input, shape index: {}]
  %s3 = inlined_call_operand.vmem [shape: f32[32,16], index: 3, kind: input, shape index: {}]
  %s4 = inlined_call_operand.vmem [shape: f32[1,16], index: 4, kind: input, shape index: {}]
  %s5 = inlined_call_operand.vmem [shape: f32[1,16], index: 5, kind: input, shape index: {}]
  %s6 = inlined_call_operand.vmem [shape: f32[1,16], index: 6, kind: input, shape index: {}]
  %s7 = inlined_call_operand.hbm [shape: f32[2,16], index: 7, kind: output, shape index: {}]
  %s8 = sld [smem:[#allocation0]]
  $region46: #{tpu_custom_call.1} parent=0
    _
  %s10 = ssub.s32 1, %s8
  %s11 = scalar_select 0, %s10, %s8
  $region1: #{tpu_custom_call.1} parent=0
    #allocation3 [shape = 'u8[1024]{0}', space=vmem, size = 0x400, scoped, tag = 'output window, operand 0, single buffered']
    #allocation4 [shape = 's32[1]{0}', space=sflag, size = 0x4, scoped, tag = 'scoped memory for tpu_custom_call.1']
    %12 = vsyncpa [#allocation4], 0
    // Predicated region
    $region2: #{tpu_custom_call.1} parent=1 // pred_check
      _
    $region3: #{tpu_custom_call.1} parent=1 // pred_check_branch
      %14 = sbr.rel (0) target = $region5
    $region4: #{tpu_custom_call.1} parent=1 // pred_region
      _
    $region5: #{tpu_custom_call.1} parent=1 // pred_fallthru
      _
    // Predicated region
    $region6: #{tpu_custom_call.1} parent=1 // pred_check
      _
    $region7: #{tpu_custom_call.1} parent=1 // pred_check_branch
      %16 = sbr.rel (0) target = $region9
    $region8: #{tpu_custom_call.1} parent=1 // pred_region
      _
    $region9: #{tpu_custom_call.1} parent=1 // pred_fallthru
      _
    // Predicated region
    $region10: #{tpu_custom_call.1} parent=1 // pred_check
      _
    $region11: #{tpu_custom_call.1} parent=1 // pred_check_branch
      %18 = sbr.rel (0) target = $region13
    $region12: #{tpu_custom_call.1} parent=1 // pred_region
      _
    $region13: #{tpu_custom_call.1} parent=1 // pred_fallthru
      _
    // Predicated region
    $region14: #{tpu_custom_call.1} parent=1 // pred_check
      _
    $region15: #{tpu_custom_call.1} parent=1 // pred_check_branch
      %20 = sbr.rel (0) target = $region17
    $region16: #{tpu_custom_call.1} parent=1 // pred_region
      _
    $region17: #{tpu_custom_call.1} parent=1 // pred_fallthru
      _
    // Predicated region
    $region18: #{tpu_custom_call.1} parent=1 // pred_check
      _
    $region19: #{tpu_custom_call.1} parent=1 // pred_check_branch
      %22 = sbr.rel (0) target = $region21
    $region20: #{tpu_custom_call.1} parent=1 // pred_region
      _
    $region21: #{tpu_custom_call.1} parent=1 // pred_fallthru
      _
    // Predicated region
    $region22: #{tpu_custom_call.1} parent=1 // pred_check
      _
    $region23: #{tpu_custom_call.1} parent=1 // pred_check_branch
      %24 = sbr.rel (0) target = $region25
    $region24: #{tpu_custom_call.1} parent=1 // pred_region
      _
    $region25: #{tpu_custom_call.1} parent=1 // pred_fallthru
      _
    // Predicated region
    $region26: #{tpu_custom_call.1} parent=1 // pred_check
      _
    $region27: #{tpu_custom_call.1} parent=1 // pred_check_branch
      %26 = sbr.rel (0) target = $region29
    $region28: #{tpu_custom_call.1} parent=1 // pred_region
      _
    $region29: #{tpu_custom_call.1} parent=1 // pred_fallthru
      _
    %p27 = scmp.eq.s32.totalorder 0, 0
    // Predicated region
    $region30: #{tpu_custom_call.1} parent=1 // pred_check
      %p28 = pneg %p27
    $region31: #{tpu_custom_call.1} parent=1 // pred_check_branch
      %30 = sbr.rel (%p28) target = $region33
    $region32: #{tpu_custom_call.1} parent=1 // pred_region
      %vm31 = vcmask 254976
      %32 = vst.msk [vmem:[#allocation2] sm:$0x3] %vm31, 0.0
    $region33: #{tpu_custom_call.1} parent=1 // pred_fallthru
      _
    %v33 = vld [vmem:[%s0] sm:$0xff]
    %v34 = vld [vmem:[%s0 + $0x8] sm:$0xff]
    %v35 = vld [vmem:[%s1] sm:$0x3]
    %v38 = vunpack.c.l.s4 1966171168
    %v39 = vunpack.c.0.s8 %v38
    %v40 = vlaneseq
    %v41 = vshrl.u32 %v40, 7
    %v42 = vsub.s32 %v39, %v41
    %v43 = vrot.slane %v35, %v42
    %v44 = vcombine.high %v43, %v43
    %v46 = vunpack.c.l.s4 1966171168
    %v47 = vunpack.c.0.s8 %v46
    %v48 = vlaneseq
    %v49 = vshrl.u32 %v48, 7
    %v50 = vsub.s32 %v47, %v49
    %v51 = vrot.slane %v43, %v50
    %v53 = vunpack.c.l.s4 1966171168
    %v54 = vunpack.c.0.s8 %v53
    %v55 = vlaneseq
    %v56 = vshrl.u32 %v55, 7
    %v57 = vsub.s32 %v54, %v56
    %v58 = vrot.slane %v44, %v57
    %vm59 = vcmask 64512
    %v60 = vsel %vm59, %v51, 0
    %62 = vmatprep.subr.mxu0 0.0
    %63 = vmatpush1.msra.mxu0 0.0
    %64 = vmatprep.subr.mxu0 0.0
    %65 = vmatpush1.msra.mxu0 0.0
    %66 = vmatprep.subr.mxu0 0.0
    %67 = vmatpush1.msra.mxu0 0.0
    %68 = vmatprep.subr.mxu0 0.0
    %69 = vmatpush1.msra.mxu0 0.0
    %70 = vmatprep.subr.mxu0 0.0
    %71 = vmatpush1.msra.mxu0 0.0
    %72 = vmatprep.subr.mxu0 0.0
    %73 = vmatpush1.msra.mxu0 0.0
    %74 = vmatprep.subr.mxu0 0.0
    %75 = vmatpush1.msra.mxu0 0.0
    %76 = vmatprep.subr.mxu0 0.0
    %77 = vmatpush1.msra.mxu0 0.0
    %78 = vmatprep.subr.mxu0 0.0
    %79 = vmatpush1.msra.mxu0 0.0
    %80 = vmatprep.subr.mxu0 0.0
    %81 = vmatpush1.msra.mxu0 0.0
    %82 = vmatprep.subr.mxu0 0.0
    %83 = vmatpush1.msra.mxu0 0.0
    %84 = vmatprep.subr.mxu0 0.0
    %85 = vmatpush1.msra.mxu0 0.0
    %86 = vmatprep.subr.mxu0 0.0
    %87 = vmatpush1.msra.mxu0 0.0
    %88 = vmatprep.subr.mxu0 0.0
    %89 = vmatpush1.msra.mxu0 0.0
    %90 = vmatprep.subr.mxu0 0.0
    %91 = vmatpush1.msra.mxu0 0.0
    %92 = vmatprep.subr.mxu0 0.0
    %93 = vmatpush1.msra.mxu0 %v33
    %94 = vmatprep.subr.mxu0 0.0
    %95 = vmatpush2.msra.mxu0 0.0
    %96 = vmatprep.subr.mxu0 0.0
    %97 = vmatpush2.msra.mxu0 0.0
    %98 = vmatprep.subr.mxu0 0.0
    %99 = vmatpush2.msra.mxu0 0.0
    %100 = vmatprep.subr.mxu0 0.0
    %101 = vmatpush2.msra.mxu0 0.0
    %102 = vmatprep.subr.mxu0 0.0
    %103 = vmatpush2.msra.mxu0 0.0
    %104 = vmatprep.subr.mxu0 0.0
    %105 = vmatpush2.msra.mxu0 0.0
    %106 = vmatprep.subr.mxu0 0.0
    %107 = vmatpush2.msra.mxu0 0.0
    %108 = vmatprep.subr.mxu0 0.0
    %109 = vmatpush2.msra.mxu0 0.0
    %110 = vmatprep.subr.mxu0 0.0
    %111 = vmatpush2.msra.mxu0 0.0
    %112 = vmatprep.subr.mxu0 0.0
    %113 = vmatpush2.msra.mxu0 0.0
    %114 = vmatprep.subr.mxu0 0.0
    %115 = vmatpush2.msra.mxu0 0.0
    %116 = vmatprep.subr.mxu0 0.0
    %117 = vmatpush2.msra.mxu0 0.0
    %118 = vmatprep.subr.mxu0 0.0
    %119 = vmatpush2.msra.mxu0 0.0
    %120 = vmatprep.subr.mxu0 0.0
    %121 = vmatpush2.msra.mxu0 0.0
    %122 = vmatprep.subr.mxu0 0.0
    %123 = vmatpush2.msra.mxu0 0.0
    %124 = vmatprep.subr.mxu0 0.0
    %125 = vmatpush2.msra.mxu0 0.0
    %126 = vmatprep.mubr.f32.mxu0 0.0
    %127 = vmatmul.mubr.f32.gmra.mxu0 %v60
    %v128 = vpop.f32.mrf.mxu0
    %v129 = vadd.f32 0.0, %v128
    %v130 = vpop.f32.mrf.mxu0
    %131 = vdwg.mxu0
    %v132 = vsel %vm59, %v58, 0
    %134 = vmatprep.subr.mxu0 0.0
    %135 = vmatpush1.msra.mxu0 0.0
    %136 = vmatprep.subr.mxu0 0.0
    %137 = vmatpush1.msra.mxu0 0.0
    %138 = vmatprep.subr.mxu0 0.0
    %139 = vmatpush1.msra.mxu0 0.0
    %140 = vmatprep.subr.mxu0 0.0
    %141 = vmatpush1.msra.mxu0 0.0
    %142 = vmatprep.subr.mxu0 0.0
    %143 = vmatpush1.msra.mxu0 0.0
    %144 = vmatprep.subr.mxu0 0.0
    %145 = vmatpush1.msra.mxu0 0.0
    %146 = vmatprep.subr.mxu0 0.0
    %147 = vmatpush1.msra.mxu0 0.0
    %148 = vmatprep.subr.mxu0 0.0
    %149 = vmatpush1.msra.mxu0 0.0
    %150 = vmatprep.subr.mxu0 0.0
    %151 = vmatpush1.msra.mxu0 0.0
    %152 = vmatprep.subr.mxu0 0.0
    %153 = vmatpush1.msra.mxu0 0.0
    %154 = vmatprep.subr.mxu0 0.0
    %155 = vmatpush1.msra.mxu0 0.0
    %156 = vmatprep.subr.mxu0 0.0
    %157 = vmatpush1.msra.mxu0 0.0
    %158 = vmatprep.subr.mxu0 0.0
    %159 = vmatpush1.msra.mxu0 0.0
    %160 = vmatprep.subr.mxu0 0.0
    %161 = vmatpush1.msra.mxu0 0.0
    %162 = vmatprep.subr.mxu0 0.0
    %163 = vmatpush1.msra.mxu0 0.0
    %164 = vmatprep.subr.mxu0 0.0
    %165 = vmatpush1.msra.mxu0 %v34
    %166 = vmatprep.subr.mxu0 0.0
    %167 = vmatpush2.msra.mxu0 0.0
    %168 = vmatprep.subr.mxu0 0.0
    %169 = vmatpush2.msra.mxu0 0.0
    %170 = vmatprep.subr.mxu0 0.0
    %171 = vmatpush2.msra.mxu0 0.0
    %172 = vmatprep.subr.mxu0 0.0
    %173 = vmatpush2.msra.mxu0 0.0
    %174 = vmatprep.subr.mxu0 0.0
    %175 = vmatpush2.msra.mxu0 0.0
    %176 = vmatprep.subr.mxu0 0.0
    %177 = vmatpush2.msra.mxu0 0.0
    %178 = vmatprep.subr.mxu0 0.0
    %179 = vmatpush2.msra.mxu0 0.0
    %180 = vmatprep.subr.mxu0 0.0
    %181 = vmatpush2.msra.mxu0 0.0
    %182 = vmatprep.subr.mxu0 0.0
    %183 = vmatpush2.msra.mxu0 0.0
    %184 = vmatprep.subr.mxu0 0.0
    %185 = vmatpush2.msra.mxu0 0.0
    %186 = vmatprep.subr.mxu0 0.0
    %187 = vmatpush2.msra.mxu0 0.0
    %188 = vmatprep.subr.mxu0 0.0
    %189 = vmatpush2.msra.mxu0 0.0
    %190 = vmatprep.subr.mxu0 0.0
    %191 = vmatpush2.msra.mxu0 0.0
    %192 = vmatprep.subr.mxu0 0.0
    %193 = vmatpush2.msra.mxu0 0.0
    %194 = vmatprep.subr.mxu0 0.0
    %195 = vmatpush2.msra.mxu0 0.0
    %196 = vmatprep.subr.mxu0 0.0
    %197 = vmatpush2.msra.mxu0 0.0
    %198 = vmatprep.mubr.f32.mxu0 0.0
    %199 = vmatmul.mubr.f32.gmra.mxu0 %v132
    %v200 = vpop.f32.mrf.mxu0
    %v201 = vadd.f32 0.0, %v200
    %v202 = vpop.f32.mrf.mxu0
    %203 = vdwg.mxu0
    %v204 = vld [vmem:[#allocation2] sm:$0x3]
    %v207 = vrot.slane %v201, 7
    %vm208 = vcmask 1041409
    %v209 = vsel %vm208, %v207, %v129
    %v211 = vadd.f32 %v204, %v209
    %vm212 = vcmask 254976
    %213 = vst.msk [vmem:[#allocation2] sm:$0x3] %vm212, %v211
    // Predicated region
    $region34: #{tpu_custom_call.1} parent=1 // pred_check
      %p214 = pneg %p27
    $region35: #{tpu_custom_call.1} parent=1 // pred_check_branch
      %216 = sbr.rel (%p214) target = $region37
    $region36: #{tpu_custom_call.1} parent=1 // pred_region
      %v217 = vld [vmem:[#allocation2] sm:$0x3]
      %v218 = vld [vmem:[%s2] sm:$0x3]
      %220 = vset.pattern.permute.xlu0 0
      %221 = vperm.xlu0 %220, %v218
      %v222 = vpop.permute.xlu0 %221
      %v224 = vmul.f32 %v217, %v222
      %v225 = vld [vmem:[%s3] sm:$0xff]
      %v226 = vld [vmem:[%s3 + $0x8] sm:$0xff]
      %v227 = vld [vmem:[%s3 + $0x10] sm:$0xff]
      %v228 = vld [vmem:[%s3 + $0x18] sm:$0xff]
      %v229 = vld [vmem:[%s4] sm:$0x1]
      %v231 = vlaneseq
      %v232 = vshrl.u32 %v231, 7
      %v233 = vsub.s32 0, %v232
      %v234 = vrot.slane %v229, %v233
      %vm236 = vcmask 261120
      %v238 = vsel %vm236, %v224, 0
      %240 = vmatprep.subr.mxu0 0.0
      %241 = vmatpush1.msra.mxu0 0.0
      %242 = vmatprep.subr.mxu0 0.0
      %243 = vmatpush1.msra.mxu0 0.0
      %244 = vmatprep.subr.mxu0 0.0
      %245 = vmatpush1.msra.mxu0 0.0
      %246 = vmatprep.subr.mxu0 0.0
      %247 = vmatpush1.msra.mxu0 0.0
      %248 = vmatprep.subr.mxu0 0.0
      %249 = vmatpush1.msra.mxu0 0.0
      %250 = vmatprep.subr.mxu0 0.0
      %251 = vmatpush1.msra.mxu0 0.0
      %252 = vmatprep.subr.mxu0 0.0
      %253 = vmatpush1.msra.mxu0 0.0
      %254 = vmatprep.subr.mxu0 0.0
      %255 = vmatpush1.msra.mxu0 0.0
      %256 = vmatprep.subr.mxu0 0.0
      %257 = vmatpush1.msra.mxu0 0.0
      %258 = vmatprep.subr.mxu0 0.0
      %259 = vmatpush1.msra.mxu0 0.0
      %260 = vmatprep.subr.mxu0 0.0
      %261 = vmatpush1.msra.mxu0 0.0
      %262 = vmatprep.subr.mxu0 0.0
      %263 = vmatpush1.msra.mxu0 0.0
      %264 = vmatprep.subr.mxu0 0.0
      %265 = vmatpush1.msra.mxu0 %v228
      %266 = vmatprep.subr.mxu0 0.0
      %267 = vmatpush1.msra.mxu0 %v227
      %268 = vmatprep.subr.mxu0 0.0
      %269 = vmatpush1.msra.mxu0 %v226
      %270 = vmatprep.subr.mxu0 0.0
      %271 = vmatpush1.msra.mxu0 %v225
      %272 = vmatprep.subr.mxu0 0.0
      %273 = vmatpush2.msra.mxu0 0.0
      %274 = vmatprep.subr.mxu0 0.0
      %275 = vmatpush2.msra.mxu0 0.0
      %276 = vmatprep.subr.mxu0 0.0
      %277 = vmatpush2.msra.mxu0 0.0
      %278 = vmatprep.subr.mxu0 0.0
      %279 = vmatpush2.msra.mxu0 0.0
      %280 = vmatprep.subr.mxu0 0.0
      %281 = vmatpush2.msra.mxu0 0.0
      %282 = vmatprep.subr.mxu0 0.0
      %283 = vmatpush2.msra.mxu0 0.0
      %284 = vmatprep.subr.mxu0 0.0
      %285 = vmatpush2.msra.mxu0 0.0
      %286 = vmatprep.subr.mxu0 0.0
      %287 = vmatpush2.msra.mxu0 0.0
      %288 = vmatprep.subr.mxu0 0.0
      %289 = vmatpush2.msra.mxu0 0.0
      %290 = vmatprep.subr.mxu0 0.0
      %291 = vmatpush2.msra.mxu0 0.0
      %292 = vmatprep.subr.mxu0 0.0
      %293 = vmatpush2.msra.mxu0 0.0
      %294 = vmatprep.subr.mxu0 0.0
      %295 = vmatpush2.msra.mxu0 0.0
      %296 = vmatprep.subr.mxu0 0.0
      %297 = vmatpush2.msra.mxu0 0.0
      %298 = vmatprep.subr.mxu0 0.0
      %299 = vmatpush2.msra.mxu0 0.0
      %300 = vmatprep.subr.mxu0 0.0
      %301 = vmatpush2.msra.mxu0 0.0
      %302 = vmatprep.subr.mxu0 0.0
      %303 = vmatpush2.msra.mxu0 0.0
      %304 = vmatprep.mubr.f32.mxu0 0.0
      %305 = vmatmul.mubr.f32.gmra.mxu0 %v238
      %v306 = vpop.f32.mrf.mxu0
      %v307 = vadd.f32 %v234, %v306
      %v308 = vpop.f32.mrf.mxu0
      %309 = vdwg.mxu0
      %vm310 = vcmask 123904
      %v311 = vsel %vm310, %v307, 0.0
      %312 = vadd.xlane.f32.xlu0 %v311
      %v313 = vpop.xlane.xlu0 %312
      %v314 = vrcp.pop 16.0
      %v315 = vmul.f32 %v313, %v314
      %v316 = vsub.f32 %v307, %v315
      %v317 = vmul.f32 %v316, %v316
      %v318 = vsel %vm310, %v317, 0.0
      %319 = vadd.xlane.f32.xlu0 %v318
      %v320 = vpop.xlane.xlu0 %319
      %v321 = vmul.f32 %v320, %v314
      %v322 = vadd.f32 %v321, 1e-12
      %v323 = vrsqrt.pop %v322
      %v324 = vmul.f32 %v316, %v323
      %v325 = vld [vmem:[%s5] sm:$0x1]
      %v327 = vlaneseq
      %v328 = vshrl.u32 %v327, 7
      %v329 = vsub.s32 0, %v328
      %v330 = vrot.slane %v325, %v329
      %v332 = vmul.f32 %v324, %v330
      %v333 = vld [vmem:[%s6] sm:$0x1]
      %v335 = vlaneseq
      %v336 = vshrl.u32 %v335, 7
      %v337 = vsub.s32 0, %v336
      %v338 = vrot.slane %v333, %v337
      %v340 = vadd.f32 %v332, %v338
      %341 = vst.msk [vmem:[#allocation3] sm:$0x3] %vm310, %v340
    $region37: #{tpu_custom_call.1} parent=1 // pred_fallthru
      _
    // Predicated region
    $region38: #{tpu_custom_call.1} parent=1 // pred_check
      _
    $region39: #{tpu_custom_call.1} parent=1 // pred_check_branch
      %343 = sbr.rel (0) target = $region41
    $region40: #{tpu_custom_call.1} parent=1 // pred_region
      %s345 = ssub.s32 32, 32
      %346 = vsyncadd [#allocation4], %s345
      %s348 = sshll.u32 [#allocation3], 4
      %s349 = int_to_ptr.vmem [resolvable:$true] %s348
      %351 = dma.vmem_to_hbm [thread:$0]  %s349, 32, %s7, [#allocation4]
    $region41: #{tpu_custom_call.1} parent=1 // pred_fallthru
      _
    // Predicated region
    $region42: #{tpu_custom_call.1} parent=1 // pred_check
      _
    $region43: #{tpu_custom_call.1} parent=1 // pred_check_branch
      %353 = sbr.rel (0) target = $region45
    $region44: #{tpu_custom_call.1} parent=1 // pred_region
      %354 = dma.done [#allocation4], 32
    $region45: #{tpu_custom_call.1} parent=1 // pred_fallthru
      _
    %355 = vsyncpa [#allocation4], 1

</llo_original>
